<compile_context>
chip_gen: v6e
topology: v6e:2x2x1
jax: 0.10.0
libtpu: 0.0.40
codegen_flags: <defaults>
</compile_context>

<pallas_src>
import jax
import jax.numpy as jnp
from jax.experimental import pallas as pl
from jax.experimental.pallas import tpu as pltpu


def _round_up(x, m):
    return ((x + m - 1) // m) * m


def _chip_plan():
    """(default token tile, vmem_limit_bytes) by TPU generation."""
    try:
        kind = jax.devices()[0].device_kind.lower()
    except Exception:
        kind = ""
    if "v7" in kind:
        # v7x: 64 MiB physical VMEM per TC -> leave headroom for Mosaic scratch.
        return 512, 56 * 1024 * 1024
    if "v6" in kind:
        # v6e: HBM-bound at small tm; large token tile crosses the ridge.
        return 768, 96 * 1024 * 1024
    # v5e / unknown: roughly balanced already.
    return 256, 64 * 1024 * 1024


def prepare_qwen2_mlp_weights(w_gate, w_up, w_down, *, ti=512):
    """One-time weight prep (call at weight-load time, NOT per forward).

    w_gate, w_up: [H, I]   (transposed nn.Linear weights)
    w_down:       [I, H]
    Returns (w_gu, w_down) with w_gu laid out tile-contiguously as
    [n_k, H, 2*ti]: block k holds [gate cols k*ti:(k+1)*ti | up cols ...].
    """
    H, I = w_gate.shape
    assert w_up.shape == (H, I) and w_down.shape == (I, H)
    if I % ti != 0 or (2 * ti) % 128 != 0:
        ti = I  # fall back to a single reduction step
    n_k = I // ti
    w_gu = jnp.concatenate(
        [w_gate.reshape(H, n_k, ti), w_up.reshape(H, n_k, ti)], axis=2
    )  # [H, n_k, 2*ti]
    w_gu = jnp.transpose(w_gu, (1, 0, 2))  # [n_k, H, 2*ti], tile-contiguous
    return w_gu, w_down


def qwen2_mlp_kernel(x_ref, wgu_ref, wd_ref, o_ref, acc_ref):
    # x_ref:   [tm, H]
    # wgu_ref: [1, H, 2*ti]  (tile k of the fused gate|up weight)
    # wd_ref:  [ti, H]
    # o_ref:   [tm, H]
    # acc_ref: [tm, H] f32 accumulator, resident across the reduction axis.
    k = pl.program_id(1)

    x = x_ref[...]
    wgu = wgu_ref[0]  # [H, 2*ti]
    # Fused gate+up projection: one MXU pass over the concatenated weight tile.
    gu = jnp.dot(x, wgu, preferred_element_type=jnp.float32)
    half = gu.shape[-1] // 2
    gate = gu[:, :half]
    up = gu[:, half:]
    # SiLU(gate) * up  (sigmoid on the EUP slot; muls on the VPU).
    h = (gate * jax.nn.sigmoid(gate)) * up
    # Partial down-projection for this intermediate chunk (f32 accumulate).
    partial = jnp.dot(
        h.astype(wd_ref.dtype), wd_ref[...], preferred_element_type=jnp.float32
    )

    @pl.when(k == 0)
    def _():
        acc_ref[...] = partial  # write first partial directly (no zero-fill)

    @pl.when(k != 0)
    def _():
        acc_ref[...] += partial

    @pl.when(k == pl.num_programs(1) - 1)
    def _():
        o_ref[...] = acc_ref[...].astype(o_ref.dtype)


def qwen2_mlp(x, w_gu, w_down, *, tm=None, vmem_limit_bytes=None):
    """Qwen2 SwiGLU MLP forward with prepared weights.

    x:      [B, S, H]
    w_gu:   [n_k, H, 2*ti]  from prepare_qwen2_mlp_weights
    w_down: [I, H]
    returns [B, S, H]
    """
    B, S, H = x.shape
    n_k, Hw, two_ti = w_gu.shape
    ti = two_ti // 2
    I = n_k * ti
    assert Hw == H and w_down.shape == (I, H)

    M = B * S
    dsize = jnp.dtype(x.dtype).itemsize
    sub = max(8, 32 // dsize)  # sublane pack: 8 f32, 16 bf16, 32 int8/fp8

    default_tm, default_vmem = _chip_plan()
    if tm is None:
        tm = default_tm
    if vmem_limit_bytes is None:
        vmem_limit_bytes = default_vmem

    if M <= tm:
        tm = _round_up(M, sub)          # small / decode shapes: one tile
    else:
        tm = _round_up(tm, 128)         # 128-aligned tall LHS for the MXU
    M_pad = _round_up(M, tm)

    x2 = x.reshape(M, H)
    if M_pad != M:
        x2 = jnp.pad(x2, ((0, M_pad - M), (0, 0)))

    m_tiles = M_pad // tm
    weight_bytes = (w_gu.size + w_down.size) * jnp.dtype(w_gu.dtype).itemsize
    cost = pl.CostEstimate(
        flops=6 * M_pad * H * I,            # 2*M*H*2I (gate/up) + 2*M*I*H (down)
        transcendentals=M_pad * I,          # sigmoid
        # Weights are re-streamed once per M tile; activations read+written once.
        bytes_accessed=2 * M_pad * H * dsize + weight_bytes * m_tiles,
    )

    out = pl.pallas_call(
        qwen2_mlp_kernel,
        out_shape=jax.ShapeDtypeStruct((M_pad, H), x.dtype),
        grid_spec=pltpu.PrefetchScalarGridSpec(
            num_scalar_prefetch=0,
            grid=(m_tiles, n_k),             # M parallel (outer), I reduction (inner)
            in_specs=[
                pl.BlockSpec((tm, H), lambda i, k: (i, 0)),            # x tile
                pl.BlockSpec((1, H, 2 * ti), lambda i, k: (k, 0, 0)),  # fused gate|up tile
                pl.BlockSpec((ti, H), lambda i, k: (k, 0)),            # down weight tile
            ],
            out_specs=pl.BlockSpec((tm, H), lambda i, k: (i, 0)),
            scratch_shapes=[pltpu.VMEM((tm, H), jnp.float32)],
        ),
        compiler_params=pltpu.CompilerParams(
            dimension_semantics=("parallel", "arbitrary"),
            vmem_limit_bytes=vmem_limit_bytes,
        ),
        cost_estimate=cost,
    )(x2, w_gu, w_down)

    return out[:M].reshape(B, S, H)


def reference_mlp(x, w_gate, w_up, w_down):
    gate = jax.nn.silu(x @ w_gate)
    up = x @ w_up
    return (gate * up) @ w_down


def _run_case(key, B, S, H, I, ti, dtype=jnp.float32):
    kx, kg, ku, kd = jax.random.split(key, 4)
    x = jax.random.normal(kx, (B, S, H), dtype=dtype)
    # PyTorch nn.Linear weight is [out, in]; transpose to input-major layout.
    gate_w = (jax.random.normal(kg, (I, H), dtype=dtype) * 0.05).astype(dtype)
    up_w = (jax.random.normal(ku, (I, H), dtype=dtype) * 0.05).astype(dtype)
    down_w = (jax.random.normal(kd, (H, I), dtype=dtype) * 0.05).astype(dtype)

    w_gate, w_up, w_down = gate_w.T, up_w.T, down_w.T

    # One-time weight prep (conceptually at weight-load time, outside forward).
    w_gu, w_dn = prepare_qwen2_mlp_weights(w_gate, w_up, w_down, ti=ti)

    out = qwen2_mlp(x, w_gu, w_dn)
    out = jax.block_until_ready(out)

    ref = reference_mlp(x, w_gate, w_up, w_down)
    assert out.shape == (B, S, H)
    assert jnp.allclose(out, ref, atol=1e-4, rtol=1e-4), "mismatch vs reference"


if __name__ == "__main__":
    key = jax.random.PRNGKey(0)
    k1, k2 = jax.random.split(key)

    # Small config consistent with the module: hidden_size=32, intermediate_size=64.
    # ti=512 > I falls back to a single reduction step.
    _run_case(k1, B=2, S=8, H=32, I=64, ti=512)

    # Exercise the multi-step reduction path + token padding (M=80, n_k=2).
    _run_case(k2, B=2, S=40, H=128, I=256, ti=128)

    print("KERNEL_OK")
</pallas_src>

<mosaic_0001>
module attributes {stable_mosaic.version = 11 : i64} {
  func.func @qwen2_mlp_kernel(%arg0: i32, %arg1: i32, %arg2: memref<16x32xf32, #tpu.memory_space<vmem>>, %arg3: memref<1x32x128xf32, #tpu.memory_space<vmem>>, %arg4: memref<64x32xf32, #tpu.memory_space<vmem>>, %arg5: memref<16x32xf32, #tpu.memory_space<vmem>>, %arg6: memref<16x32xf32, #tpu.memory_space<vmem>>) attributes {dimension_semantics = [#tpu.dimension_semantics<parallel>, #tpu.dimension_semantics<arbitrary>], iteration_bounds = array<i64: 1, 1>, scalar_prefetch = 0 : i64, scratch_operands = 1 : i64, tpu.core_type = #tpu.core_type<tc>, window_params = [{transform_indices = @transform_0, window_bounds = array<i64: 16, 32>}, {transform_indices = @transform_1, window_bounds = array<i64: 1, 32, 128>}, {transform_indices = @transform_2, window_bounds = array<i64: 64, 32>}, {transform_indices = @transform_3, window_bounds = array<i64: 16, 32>}]} {
    %c0 = arith.constant 0 : index
    %c0_0 = arith.constant 0 : index
    %0 = vector.load %arg2[%c0, %c0_0] : memref<16x32xf32, #tpu.memory_space<vmem>>, vector<16x32xf32>
    %c0_1 = arith.constant 0 : index
    %c0_2 = arith.constant 0 : index
    %c0_3 = arith.constant 0 : index
    %1 = vector.load %arg3[%c0_1, %c0_2, %c0_3] : memref<1x32x128xf32, #tpu.memory_space<vmem>>, vector<1x32x128xf32>
    %2 = vector.shape_cast %1 : vector<1x32x128xf32> to vector<32x128xf32>
    %cst = arith.constant dense<0.000000e+00> : vector<16x128xf32>
    %3 = tpu.matmul %0, %2, %cst {dimension_numbers = #tpu.dot_dimension_numbers<[1], [0], [0], [1], [0, 0, 1, 1], [], []>} : vector<16x32xf32>, vector<32x128xf32>, vector<16x128xf32> -> vector<16x128xf32>
    %4 = vector.extract_strided_slice %3 {offsets = [0, 0], sizes = [16, 64], strides = [1, 1]} : vector<16x128xf32> to vector<16x64xf32>
    %5 = vector.extract_strided_slice %3 {offsets = [0, 64], sizes = [16, 64], strides = [1, 1]} : vector<16x128xf32> to vector<16x64xf32>
    %6 = arith.negf %4 : vector<16x64xf32>
    %7 = math.exp %6 : vector<16x64xf32>
    %cst_4 = arith.constant 1.000000e+00 : f32
    %8 = vector.broadcast %cst_4 : f32 to vector<16x64xf32>
    %9 = arith.addf %8, %7 : vector<16x64xf32>
    %10 = arith.divf %8, %9 : vector<16x64xf32>
    %11 = arith.mulf %4, %10 : vector<16x64xf32>
    %12 = arith.mulf %11, %5 : vector<16x64xf32>
    %c0_5 = arith.constant 0 : index
    %c0_6 = arith.constant 0 : index
    %13 = vector.load %arg4[%c0_5, %c0_6] : memref<64x32xf32, #tpu.memory_space<vmem>>, vector<64x32xf32>
    %cst_7 = arith.constant dense<0.000000e+00> : vector<16x32xf32>
    %14 = tpu.matmul %12, %13, %cst_7 {dimension_numbers = #tpu.dot_dimension_numbers<[1], [0], [0], [1], [0, 0, 1, 1], [], []>} : vector<16x64xf32>, vector<64x32xf32>, vector<16x32xf32> -> vector<16x32xf32>
    %c0_i32 = arith.constant 0 : i32
    %15 = arith.cmpi eq, %arg1, %c0_i32 : i32
    %16 = arith.extui %15 : i1 to i32
    %c0_i32_8 = arith.constant 0 : i32
    %17 = arith.cmpi ne, %16, %c0_i32_8 : i32
    scf.if %17 {
      %c0_13 = arith.constant 0 : index
      %c0_14 = arith.constant 0 : index
      %24 = vector.load %arg6[%c0_13, %c0_14] : memref<16x32xf32, #tpu.memory_space<vmem>>, vector<16x32xf32>
      tpu.vector_store %arg6[%c0_13, %c0_14], %14 {strides = array<i32>} : memref<16x32xf32, #tpu.memory_space<vmem>>, vector<16x32xf32>,
    } else {
    }
    %c0_i32_9 = arith.constant 0 : i32
    %18 = arith.cmpi ne, %arg1, %c0_i32_9 : i32
    %19 = arith.extui %18 : i1 to i32
    %c0_i32_10 = arith.constant 0 : i32
    %20 = arith.cmpi ne, %19, %c0_i32_10 : i32
    scf.if %20 {
      %c0_13 = arith.constant 0 : index
      %c0_14 = arith.constant 0 : index
      %24 = vector.load %arg6[%c0_13, %c0_14] : memref<16x32xf32, #tpu.memory_space<vmem>>, vector<16x32xf32>
      %25 = arith.addf %24, %14 : vector<16x32xf32>
      %c0_15 = arith.constant 0 : index
      %c0_16 = arith.constant 0 : index
      %26 = vector.load %arg6[%c0_15, %c0_16] : memref<16x32xf32, #tpu.memory_space<vmem>>, vector<16x32xf32>
      tpu.vector_store %arg6[%c0_15, %c0_16], %25 {strides = array<i32>} : memref<16x32xf32, #tpu.memory_space<vmem>>, vector<16x32xf32>,
    } else {
    }
    %c0_i32_11 = arith.constant 0 : i32
    %21 = arith.cmpi eq, %arg1, %c0_i32_11 : i32
    %22 = arith.extui %21 : i1 to i32
    %c0_i32_12 = arith.constant 0 : i32
    %23 = arith.cmpi ne, %22, %c0_i32_12 : i32
    scf.if %23 {
      %c0_13 = arith.constant 0 : index
      %c0_14 = arith.constant 0 : index
      %24 = vector.load %arg6[%c0_13, %c0_14] : memref<16x32xf32, #tpu.memory_space<vmem>>, vector<16x32xf32>
      %c0_15 = arith.constant 0 : index
      %c0_16 = arith.constant 0 : index
      %25 = vector.load %arg5[%c0_15, %c0_16] : memref<16x32xf32, #tpu.memory_space<vmem>>, vector<16x32xf32>
      tpu.vector_store %arg5[%c0_15, %c0_16], %24 {strides = array<i32>} : memref<16x32xf32, #tpu.memory_space<vmem>>, vector<16x32xf32>,
    } else {
    }
    return
  }
  func.func @transform_0(%arg0: i32, %arg1: i32) -> (i32, i32) {
    %c0_i32 = arith.constant 0 : i32
    %c0_i32_0 = arith.constant 0 : i32
    return %arg0, %c0_i32 : i32, i32
  }
  func.func @transform_1(%arg0: i32, %arg1: i32) -> (i32, i32, i32) {
    %c0_i32 = arith.constant 0 : i32
    %c0_i32_0 = arith.constant 0 : i32
    %c0_i32_1 = arith.constant 0 : i32
    return %arg1, %c0_i32, %c0_i32_0 : i32, i32, i32
  }
  func.func @transform_2(%arg0: i32, %arg1: i32) -> (i32, i32) {
    %c0_i32 = arith.constant 0 : i32
    %c0_i32_0 = arith.constant 0 : i32
    return %arg1, %c0_i32 : i32, i32
  }
  func.func @transform_3(%arg0: i32, %arg1: i32) -> (i32, i32) {
    %c0_i32 = arith.constant 0 : i32
    %c0_i32_0 = arith.constant 0 : i32
    return %arg0, %c0_i32 : i32, i32
  }
}

</mosaic_0001>

<llo_original>
// kernel: tpu_custom_call.1
$region0: #{tpu_custom_call.1}
  #allocation0 [shape = 'u32[]', space=smem, size = 0x4, offset = 0x4, fixed_abs, tag = 'smem constant byte address 0x4 - core index']
  #allocation1 [shape = 'u32[144,128]{1,0:T(1,128)}', space=vmem, size = 0x12000, scoped, tag = 'internal scratch']
  #allocation2 [shape = 'f32[16,32]{1,0:T(8,128)}', space=vmem, size = 0x2000, scoped, tag = 'scratch operand']
  %s0 = inlined_call_operand.vmem [shape: f32[16,32], index: 0, kind: input, shape index: {}]
  %s1 = inlined_call_operand.vmem [shape: f32[1,32,128], index: 1, kind: input, shape index: {}]
  %s2 = inlined_call_operand.vmem [shape: f32[64,32], index: 2, kind: input, shape index: {}]
  %s3 = inlined_call_operand.hbm [shape: f32[16,32], index: 3, kind: output, shape index: {}]
  %s4 = sld [smem:[#allocation0]]
  $region34: #{tpu_custom_call.1} parent=0
    _
  %s6 = ssub.s32 1, %s4
  %s7 = scalar_select 0, %s6, %s4
  $region1: #{tpu_custom_call.1} parent=0
    #allocation3 [shape = 'u8[8192]{0}', space=vmem, size = 0x2000, scoped, tag = 'output window, operand 0, single buffered']
    #allocation4 [shape = 's32[1]{0}', space=sflag, size = 0x4, scoped, tag = 'scoped memory for tpu_custom_call.1']
    %8 = vsyncpa [#allocation4], 0
    // Predicated region
    $region2: #{tpu_custom_call.1} parent=1 // pred_check
      _
    $region3: #{tpu_custom_call.1} parent=1 // pred_check_branch
      %10 = sbr.rel (0) target = $region5
    $region4: #{tpu_custom_call.1} parent=1 // pred_region
      _
    $region5: #{tpu_custom_call.1} parent=1 // pred_fallthru
      _
    // Predicated region
    $region6: #{tpu_custom_call.1} parent=1 // pred_check
      _
    $region7: #{tpu_custom_call.1} parent=1 // pred_check_branch
      %12 = sbr.rel (0) target = $region9
    $region8: #{tpu_custom_call.1} parent=1 // pred_region
      _
    $region9: #{tpu_custom_call.1} parent=1 // pred_fallthru
      _
    // Predicated region
    $region10: #{tpu_custom_call.1} parent=1 // pred_check
      _
    $region11: #{tpu_custom_call.1} parent=1 // pred_check_branch
      %14 = sbr.rel (0) target = $region13
    $region12: #{tpu_custom_call.1} parent=1 // pred_region
      _
    $region13: #{tpu_custom_call.1} parent=1 // pred_fallthru
      _
    %v15 = vld [vmem:[%s0] sm:$0xff]
    %v16 = vld [vmem:[%s0 + $0x8] sm:$0xff]
    %v17 = vld [vmem:[%s1] sm:$0xff]
    %v18 = vld [vmem:[%s1 + $0x8] sm:$0xff]
    %v19 = vld [vmem:[%s1 + $0x10] sm:$0xff]
    %v20 = vld [vmem:[%s1 + $0x18] sm:$0xff]
    %vm21 = vcmask 261120
    %v23 = vsel %vm21, %v15, 0
    %v26 = vsel %vm21, %v16, 0
    %28 = vmatprep.subr.mxu0 0.0
    %29 = vmatpush1.msra.mxu0 0.0
    %30 = vmatprep.subr.mxu0 0.0
    %31 = vmatpush1.msra.mxu0 0.0
    %32 = vmatprep.subr.mxu0 0.0
    %33 = vmatpush1.msra.mxu0 0.0
    %34 = vmatprep.subr.mxu0 0.0
    %35 = vmatpush1.msra.mxu0 0.0
    %36 = vmatprep.subr.mxu0 0.0
    %37 = vmatpush1.msra.mxu0 0.0
    %38 = vmatprep.subr.mxu0 0.0
    %39 = vmatpush1.msra.mxu0 0.0
    %40 = vmatprep.subr.mxu0 0.0
    %41 = vmatpush1.msra.mxu0 0.0
    %42 = vmatprep.subr.mxu0 0.0
    %43 = vmatpush1.msra.mxu0 0.0
    %44 = vmatprep.subr.mxu0 0.0
    %45 = vmatpush1.msra.mxu0 0.0
    %46 = vmatprep.subr.mxu0 0.0
    %47 = vmatpush1.msra.mxu0 0.0
    %48 = vmatprep.subr.mxu0 0.0
    %49 = vmatpush1.msra.mxu0 0.0
    %50 = vmatprep.subr.mxu0 0.0
    %51 = vmatpush1.msra.mxu0 0.0
    %52 = vmatprep.subr.mxu0 0.0
    %53 = vmatpush1.msra.mxu0 %v20
    %54 = vmatprep.subr.mxu0 0.0
    %55 = vmatpush1.msra.mxu0 %v19
    %56 = vmatprep.subr.mxu0 0.0
    %57 = vmatpush1.msra.mxu0 %v18
    %58 = vmatprep.subr.mxu0 0.0
    %59 = vmatpush1.msra.mxu0 %v17
    %60 = vmatprep.subr.mxu0 0.0
    %61 = vmatpush2.msra.mxu0 0.0
    %62 = vmatprep.subr.mxu0 0.0
    %63 = vmatpush2.msra.mxu0 0.0
    %64 = vmatprep.subr.mxu0 0.0
    %65 = vmatpush2.msra.mxu0 0.0
    %66 = vmatprep.subr.mxu0 0.0
    %67 = vmatpush2.msra.mxu0 0.0
    %68 = vmatprep.subr.mxu0 0.0
    %69 = vmatpush2.msra.mxu0 0.0
    %70 = vmatprep.subr.mxu0 0.0
    %71 = vmatpush2.msra.mxu0 0.0
    %72 = vmatprep.subr.mxu0 0.0
    %73 = vmatpush2.msra.mxu0 0.0
    %74 = vmatprep.subr.mxu0 0.0
    %75 = vmatpush2.msra.mxu0 0.0
    %76 = vmatprep.subr.mxu0 0.0
    %77 = vmatpush2.msra.mxu0 0.0
    %78 = vmatprep.subr.mxu0 0.0
    %79 = vmatpush2.msra.mxu0 0.0
    %80 = vmatprep.subr.mxu0 0.0
    %81 = vmatpush2.msra.mxu0 0.0
    %82 = vmatprep.subr.mxu0 0.0
    %83 = vmatpush2.msra.mxu0 0.0
    %84 = vmatprep.subr.mxu0 0.0
    %85 = vmatpush2.msra.mxu0 0.0
    %86 = vmatprep.subr.mxu0 0.0
    %87 = vmatpush2.msra.mxu0 0.0
    %88 = vmatprep.subr.mxu0 0.0
    %89 = vmatpush2.msra.mxu0 0.0
    %90 = vmatprep.subr.mxu0 0.0
    %91 = vmatpush2.msra.mxu0 0.0
    %92 = vmatprep.mubr.f32.mxu0 0.0
    %93 = vmatmul.mubr.f32.gmra.mxu0 %v23
    %v94 = vpop.f32.mrf.mxu0
    %v95 = vadd.f32 0.0, %v94
    %v96 = vpop.f32.mrf.mxu0
    %97 = vmatprep.mubr.f32.mxu0 0.0
    %98 = vmatmul.mubr.f32.gmra.mxu0 %v26
    %v99 = vpop.f32.mrf.mxu0
    %v100 = vadd.f32 0.0, %v99
    %v101 = vpop.f32.mrf.mxu0
    %102 = vdwg.mxu0
    %v103 = vxor.u32 %v95, 2147483648
    %v104 = vxor.u32 %v100, 2147483648
    %v105 = vmul.f32 %v103, 1.442695
    %v106 = vpow.pop %v105
    %v107 = vmul.f32 %v104, 1.442695
    %v108 = vpow.pop %v107
    %v109 = vadd.f32 %v106, 1.0
    %v110 = vadd.f32 %v108, 1.0
    %v111 = vrcp.pop %v109
    %v112 = vmul.f32 1.0, %v111
    %v113 = vrcp.pop %v110
    %v114 = vmul.f32 1.0, %v113
    %v115 = vmul.f32 %v95, %v112
    %v116 = vmul.f32 %v100, %v114
    %119 = vrot.lane.b32.xlu0 %v95, 64
    %v120 = vpop.permute.xlu0 %119
    %121 = vrot.lane.b32.xlu0 %v100, 64
    %v122 = vpop.permute.xlu0 %121
    %v125 = vmul.f32 %v115, %v120
    %v126 = vmul.f32 %v116, %v122
    %v127 = vld [vmem:[%s2] sm:$0xff]
    %v128 = vld [vmem:[%s2 + $0x8] sm:$0xff]
    %v129 = vld [vmem:[%s2 + $0x10] sm:$0xff]
    %v130 = vld [vmem:[%s2 + $0x18] sm:$0xff]
    %v131 = vld [vmem:[%s2 + $0x20] sm:$0xff]
    %v132 = vld [vmem:[%s2 + $0x28] sm:$0xff]
    %v133 = vld [vmem:[%s2 + $0x30] sm:$0xff]
    %v134 = vld [vmem:[%s2 + $0x38] sm:$0xff]
    %vm135 = vcmask 523264
    %v137 = vsel %vm135, %v125, 0
    %v140 = vsel %vm135, %v126, 0
    %142 = vmatprep.subr.mxu0 0.0
    %143 = vmatpush1.msra.mxu0 0.0
    %144 = vmatprep.subr.mxu0 0.0
    %145 = vmatpush1.msra.mxu0 0.0
    %146 = vmatprep.subr.mxu0 0.0
    %147 = vmatpush1.msra.mxu0 0.0
    %148 = vmatprep.subr.mxu0 0.0
    %149 = vmatpush1.msra.mxu0 0.0
    %150 = vmatprep.subr.mxu0 0.0
    %151 = vmatpush1.msra.mxu0 0.0
    %152 = vmatprep.subr.mxu0 0.0
    %153 = vmatpush1.msra.mxu0 0.0
    %154 = vmatprep.subr.mxu0 0.0
    %155 = vmatpush1.msra.mxu0 0.0
    %156 = vmatprep.subr.mxu0 0.0
    %157 = vmatpush1.msra.mxu0 0.0
    %158 = vmatprep.subr.mxu0 0.0
    %159 = vmatpush1.msra.mxu0 %v134
    %160 = vmatprep.subr.mxu0 0.0
    %161 = vmatpush1.msra.mxu0 %v133
    %162 = vmatprep.subr.mxu0 0.0
    %163 = vmatpush1.msra.mxu0 %v132
    %164 = vmatprep.subr.mxu0 0.0
    %165 = vmatpush1.msra.mxu0 %v131
    %166 = vmatprep.subr.mxu0 0.0
    %167 = vmatpush1.msra.mxu0 %v130
    %168 = vmatprep.subr.mxu0 0.0
    %169 = vmatpush1.msra.mxu0 %v129
    %170 = vmatprep.subr.mxu0 0.0
    %171 = vmatpush1.msra.mxu0 %v128
    %172 = vmatprep.subr.mxu0 0.0
    %173 = vmatpush1.msra.mxu0 %v127
    %174 = vmatprep.subr.mxu0 0.0
    %175 = vmatpush2.msra.mxu0 0.0
    %176 = vmatprep.subr.mxu0 0.0
    %177 = vmatpush2.msra.mxu0 0.0
    %178 = vmatprep.subr.mxu0 0.0
    %179 = vmatpush2.msra.mxu0 0.0
    %180 = vmatprep.subr.mxu0 0.0
    %181 = vmatpush2.msra.mxu0 0.0
    %182 = vmatprep.subr.mxu0 0.0
    %183 = vmatpush2.msra.mxu0 0.0
    %184 = vmatprep.subr.mxu0 0.0
    %185 = vmatpush2.msra.mxu0 0.0
    %186 = vmatprep.subr.mxu0 0.0
    %187 = vmatpush2.msra.mxu0 0.0
    %188 = vmatprep.subr.mxu0 0.0
    %189 = vmatpush2.msra.mxu0 0.0
    %190 = vmatprep.subr.mxu0 0.0
    %191 = vmatpush2.msra.mxu0 0.0
    %192 = vmatprep.subr.mxu0 0.0
    %193 = vmatpush2.msra.mxu0 0.0
    %194 = vmatprep.subr.mxu0 0.0
    %195 = vmatpush2.msra.mxu0 0.0
    %196 = vmatprep.subr.mxu0 0.0
    %197 = vmatpush2.msra.mxu0 0.0
    %198 = vmatprep.subr.mxu0 0.0
    %199 = vmatpush2.msra.mxu0 0.0
    %200 = vmatprep.subr.mxu0 0.0
    %201 = vmatpush2.msra.mxu0 0.0
    %202 = vmatprep.subr.mxu0 0.0
    %203 = vmatpush2.msra.mxu0 0.0
    %204 = vmatprep.subr.mxu0 0.0
    %205 = vmatpush2.msra.mxu0 0.0
    %206 = vmatprep.mubr.f32.mxu0 0.0
    %207 = vmatmul.mubr.f32.gmra.mxu0 %v137
    %v208 = vpop.f32.mrf.mxu0
    %v209 = vadd.f32 0.0, %v208
    %v210 = vpop.f32.mrf.mxu0
    %211 = vmatprep.mubr.f32.mxu0 0.0
    %212 = vmatmul.mubr.f32.gmra.mxu0 %v140
    %v213 = vpop.f32.mrf.mxu0
    %v214 = vadd.f32 0.0, %v213
    %v215 = vpop.f32.mrf.mxu0
    %216 = vdwg.mxu0
    %p217 = scmp.eq.s32.totalorder 0, 0
    // Predicated region
    $region14: #{tpu_custom_call.1} parent=1 // pred_check
      %p218 = pneg %p217
    $region15: #{tpu_custom_call.1} parent=1 // pred_check_branch
      %220 = sbr.rel (%p218) target = $region17
    $region16: #{tpu_custom_call.1} parent=1 // pred_region
      %221 = vst.msk [vmem:[#allocation2] sm:$0xff] %vm21, %v209
      %222 = vst.msk [vmem:[#allocation2 + $0x8] sm:$0xff] %vm21, %v214
    $region17: #{tpu_custom_call.1} parent=1 // pred_fallthru
      _
    %p223 = scmp.ne.s32.totalorder 0, 0
    // Predicated region
    $region18: #{tpu_custom_call.1} parent=1 // pred_check
      %p224 = pneg %p223
    $region19: #{tpu_custom_call.1} parent=1 // pred_check_branch
      %226 = sbr.rel (%p224) target = $region21
    $region20: #{tpu_custom_call.1} parent=1 // pred_region
      %v227 = vld [vmem:[#allocation2] sm:$0xff]
      %v228 = vld [vmem:[#allocation2 + $0x8] sm:$0xff]
      %v229 = vadd.f32 %v227, %v209
      %v230 = vadd.f32 %v228, %v214
      %231 = vst.msk [vmem:[#allocation2] sm:$0xff] %vm21, %v229
      %232 = vst.msk [vmem:[#allocation2 + $0x8] sm:$0xff] %vm21, %v230
    $region21: #{tpu_custom_call.1} parent=1 // pred_fallthru
      _
    // Predicated region
    $region22: #{tpu_custom_call.1} parent=1 // pred_check
      %p233 = pneg %p217
    $region23: #{tpu_custom_call.1} parent=1 // pred_check_branch
      %235 = sbr.rel (%p233) target = $region25
    $region24: #{tpu_custom_call.1} parent=1 // pred_region
      %v236 = vld [vmem:[#allocation2] sm:$0xff]
      %v237 = vld [vmem:[#allocation2 + $0x8] sm:$0xff]
      %238 = vst.msk [vmem:[#allocation3] sm:$0xff] %vm21, %v236
      %239 = vst.msk [vmem:[#allocation3 + $0x8] sm:$0xff] %vm21, %v237
    $region25: #{tpu_custom_call.1} parent=1 // pred_fallthru
      _
    // Predicated region
    $region26: #{tpu_custom_call.1} parent=1 // pred_check
      _
    $region27: #{tpu_custom_call.1} parent=1 // pred_check_branch
      %241 = sbr.rel (0) target = $region29
    $region28: #{tpu_custom_call.1} parent=1 // pred_region
      %s243 = ssub.s32 256, 256
      %244 = vsyncadd [#allocation4], %s243
      %s245 = sshll.u32 [#allocation3], 4
      %s246 = int_to_ptr.vmem [resolvable:$true] %s245
      %251 = dma.vmem_to_hbm [thread:$0]  %s246, 256, %s3, [#allocation4], 128, 128, 8
    $region29: #{tpu_custom_call.1} parent=1 // pred_fallthru
      _
    // Predicated region
    $region30: #{tpu_custom_call.1} parent=1 // pred_check
      _
    $region31: #{tpu_custom_call.1} parent=1 // pred_check_branch
      %253 = sbr.rel (0) target = $region33
    $region32: #{tpu_custom_call.1} parent=1 // pred_region
      %254 = dma.done [#allocation4], 256
    $region33: #{tpu_custom_call.1} parent=1 // pred_fallthru
      _
    %255 = vsyncpa [#allocation4], 1

</llo_original>
